<compile_context>
chip_gen: v6e
topology: v6e:2x2x1
jax: 0.10.0
libtpu: 0.0.40
codegen_flags: <defaults>
</compile_context>

<pallas_src>
from typing import NamedTuple, Optional

import jax
import jax.numpy as jnp
from jax.experimental import pallas as pl
from jax.experimental.pallas import tpu as pltpu


DEFAULT_TM = 512
DEFAULT_TN = 512
DEFAULT_TK = 1024


def _round_up(x, m):
    return ((x + m - 1) // m) * m


class PreparedWeight(NamedTuple):
    """Weight pre-transposed to (K, N), zero-padded to tile multiples, cast to the
    MXU compute dtype.  Build once (module init), reuse every forward."""
    wt: jax.Array          # (Kp, Np)
    n: int                 # logical out_features
    k: int                 # logical in_features
    tn: int
    tk: int


def prepare_weight(weight, *, tn=None, tk=None, compute_dtype=jnp.bfloat16):
    """weight: (N, K) PyTorch layout -> PreparedWeight with lane-dense (K, N) layout."""
    N, K = weight.shape
    tn = DEFAULT_TN if tn is None else tn
    tk = DEFAULT_TK if tk is None else tk
    tn = min(tn, _round_up(N, 128))
    tk = min(tk, _round_up(K, 128))
    Np = _round_up(N, tn)
    Kp = _round_up(K, tk)
    wt = weight.T                                    # one-time transpose to (K, N)
    if (Kp, Np) != (K, N):
        wt = jnp.pad(wt, ((0, Kp - K), (0, Np - N)))  # zero pad is inert for the matmul
    if compute_dtype is not None:
        wt = wt.astype(compute_dtype)                # bf16 halves weight HBM traffic
    return PreparedWeight(wt=wt, n=N, k=K, tn=tn, tk=tk)


def _prune(x, thr):
    # Prune on the ORIGINAL (typically fp32) values before any downcast so borderline
    # activations don't flip across the threshold.
    return jnp.where(jnp.abs(x) >= thr, x, jnp.zeros_like(x))


def _make_rtp_kernel(nk: int):
    """nk = number of K reduction steps (static)."""
    if nk == 1:
        # Single-K-step fast path: no accumulator scratch, write the tile directly.
        def kernel(thr_ref, x_ref, wt_ref, o_ref):
            x_pruned = _prune(x_ref[...], thr_ref[0])
            o_ref[...] = jnp.dot(
                x_pruned.astype(wt_ref.dtype), wt_ref[...],
                preferred_element_type=jnp.float32,
            ).astype(o_ref.dtype)
        return kernel

    def kernel(thr_ref, x_ref, wt_ref, o_ref, acc_ref):
        k = pl.program_id(2)
        x_pruned = _prune(x_ref[...], thr_ref[0])
        partial = jnp.dot(x_pruned.astype(wt_ref.dtype), wt_ref[...],
                          preferred_element_type=jnp.float32)

        @pl.when(k == 0)
        def _init():
            acc_ref[...] = partial

        @pl.when(jnp.logical_and(k > 0, k < nk - 1))
        def _accum():
            acc_ref[...] = acc_ref[...] + partial

        @pl.when(k == nk - 1)
        def _finalize():
            # Fold the last partial straight into the output store: saves one full
            # (tm, tn) fp32 accumulator write + re-read per output tile.
            o_ref[...] = (acc_ref[...] + partial).astype(o_ref.dtype)

    return kernel


def rtp_linear(x, weight, threshold, *, tm=None, tn=None, tk=None,
               compute_dtype=jnp.bfloat16, weight_buffers: int = 2):
    """x: [M, K] activations; weight: [N, K] (PyTorch layout) or PreparedWeight;
    threshold: scalar.  Returns [M, N] = prune(x) @ weight.T."""
    if isinstance(weight, PreparedWeight):
        pw = weight
    else:
        pw = prepare_weight(weight, tn=tn, tk=tk, compute_dtype=compute_dtype)

    M, K = x.shape
    assert K == pw.k, "in_features mismatch"
    N = pw.n
    Kp, Np = pw.wt.shape
    tn, tk = pw.tn, pw.tk

    # Row tile: clamp to the sublane-aligned batch size (8 rows for 4-byte, 16 for 2-byte).
    x_itemsize = jnp.dtype(x.dtype).itemsize
    sub = max(8, 32 // x_itemsize)
    tm = DEFAULT_TM if tm is None else tm
    tm = min(tm, _round_up(M, sub))
    Mp = _round_up(M, tm)

    # Keep >= 2 parallel output tiles on non-tiny N so both v7x TensorCores get work.
    if (Mp // tm) * (Np // tn) == 1 and Np >= 512:
        tn //= 2                      # Np == tn here, so tn//2 (multiple of 128) still divides Np

    # Pad activations only when needed; zero rows/cols are inert for prune and matmul.
    if (Mp, Kp) != (M, K):
        xp = jnp.pad(x, ((0, Mp - M), (0, Kp - K)))
    else:
        xp = x

    thr = jnp.asarray(threshold, dtype=jnp.float32).reshape((1,))

    grid = (Mp // tm, Np // tn, Kp // tk)
    nk = grid[2]

    out_dtype = x.dtype
    w_itemsize = jnp.dtype(pw.wt.dtype).itemsize
    o_itemsize = jnp.dtype(out_dtype).itemsize

    # Double-buffered VMEM footprint -> scoped limit with headroom, capped at 48 MiB so a
    # single config is safe on v7x (64 MiB physical) while still raising v5e's 16 MiB default.
    footprint = (2 * tm * tk * x_itemsize
                 + max(2, weight_buffers) * tk * tn * w_itemsize
                 + 2 * tm * tn * o_itemsize
                 + tm * tn * 4)
    vmem_limit = int(min(max(footprint * 3 // 2, 24 << 20), 48 << 20))

    # Weight is the dominant DMA stream; deeper buffering can be requested if profiling
    # shows exposed DMA at k-step boundaries (weight_buffers=3).
    if weight_buffers != 2:
        w_spec = pl.BlockSpec((tk, tn), lambda i, j, k, thr_ref: (k, j),
                              pipeline_mode=pl.Buffered(weight_buffers))
    else:
        w_spec = pl.BlockSpec((tk, tn), lambda i, j, k, thr_ref: (k, j))

    scratch_shapes = [] if nk == 1 else [pltpu.VMEM((tm, tn), jnp.float32)]

    out = pl.pallas_call(
        _make_rtp_kernel(nk),
        out_shape=jax.ShapeDtypeStruct((Mp, Np), out_dtype),
        grid_spec=pltpu.PrefetchScalarGridSpec(
            num_scalar_prefetch=1,                       # threshold -> SMEM
            grid=grid,
            in_specs=[
                # activations: (tm, tk) tile at (i, k)
                pl.BlockSpec((tm, tk), lambda i, j, k, thr_ref: (i, k)),
                # weight (K, N): (tk, tn) tile at (k, j) — lane-dense N
                w_spec,
            ],
            # output block constant across k -> resident across the reduction axis
            out_specs=pl.BlockSpec((tm, tn), lambda i, j, k, thr_ref: (i, j)),
            scratch_shapes=scratch_shapes,
        ),
        compiler_params=pltpu.CompilerParams(
            dimension_semantics=("parallel", "parallel", "arbitrary"),
            vmem_limit_bytes=vmem_limit,
        ),
        cost_estimate=pl.CostEstimate(
            flops=2 * M * N * K,
            transcendentals=0,
            # Actual tiled traffic: x streamed once per N-tile, weight once per M-tile.
            bytes_accessed=(grid[1] * Mp * Kp * x_itemsize
                            + grid[0] * Kp * Np * w_itemsize
                            + Mp * Np * o_itemsize),
        ),
    )(thr, xp, pw.wt)

    if (Mp, Np) != (M, N):
        out = out[:M, :N]
    return out


class RTPLinear:
    """JAX analogue of the PyTorch rtp Linear module: weight transpose/pad/cast is done
    ONCE at construction, so every forward call runs only the Pallas kernel."""

    def __init__(self, weight, *, compute_dtype=jnp.bfloat16, tn=None, tk=None):
        self.out_features, self.in_features = weight.shape
        self.prepared = prepare_weight(weight, tn=tn, tk=tk, compute_dtype=compute_dtype)

    def __call__(self, last_out, threshold):
        return rtp_linear(last_out, self.prepared, threshold)


def _reference(x, weight, threshold):
    x_pruned = jnp.where(jnp.abs(x) >= threshold, x, 0.0)
    return x_pruned @ weight.T


if __name__ == "__main__":
    key = jax.random.PRNGKey(0)
    k_x, k_w, k_x2, k_w2, k_x3, k_w3 = jax.random.split(key, 6)

    # Case 1: module-style usage — cached prepared weight, bf16 MXU path.
    batch, in_features, out_features = 8, 32, 64
    x = jax.random.normal(k_x, (batch, in_features), dtype=jnp.float32)
    w = jax.random.normal(k_w, (out_features, in_features), dtype=jnp.float32) * 0.1
    threshold = 0.5

    module = RTPLinear(w)                                  # prep once (transpose+pad+bf16)
    y = jax.block_until_ready(module(x, threshold))
    y_ref = _reference(x, w, threshold)
    assert y.shape == (batch, out_features)
    assert jnp.allclose(y, y_ref, atol=3e-2, rtol=3e-2), "case 1 (bf16) mismatch vs reference"

    # Case 2: ragged shapes exercising the padding path, fp32 compute (tight check).
    M2, K2, N2 = 9, 160, 192
    x2 = jax.random.normal(k_x2, (M2, K2), dtype=jnp.float32)
    w2 = jax.random.normal(k_w2, (N2, K2), dtype=jnp.float32) * 0.05
    y2 = jax.block_until_ready(rtp_linear(x2, w2, 0.3, compute_dtype=jnp.float32))
    y2_ref = _reference(x2, w2, 0.3)
    assert y2.shape == (M2, N2)
    assert jnp.allclose(y2, y2_ref, atol=1e-4, rtol=1e-4), "case 2 (fp32) mismatch vs reference"

    # Case 3: explicit small tiles force a multi-step K reduction (nk=3) and a 2-wide
    # parallel N grid, exercising the accumulator init/accumulate/finalize path.
    M3, K3, N3 = 32, 384, 256
    x3 = jax.random.normal(k_x3, (M3, K3), dtype=jnp.float32)
    w3 = jax.random.normal(k_w3, (N3, K3), dtype=jnp.float32) * 0.05
    y3 = jax.block_until_ready(
        rtp_linear(x3, w3, 0.2, tm=32, tn=128, tk=128, compute_dtype=jnp.float32))
    y3_ref = _reference(x3, w3, 0.2)
    assert y3.shape == (M3, N3)
    assert jnp.allclose(y3, y3_ref, atol=5e-4, rtol=5e-4), "case 3 (multi-K) mismatch vs reference"

    print("KERNEL_OK")
</pallas_src>

<mosaic_0001>
module attributes {stable_mosaic.version = 11 : i64} {
  func.func @kernel(%arg0: i32, %arg1: i32, %arg2: i32, %arg3: memref<1xf32, #tpu.memory_space<smem>>, %arg4: memref<8x128xf32, #tpu.memory_space<vmem>>, %arg5: memref<128x128xbf16, #tpu.memory_space<vmem>>, %arg6: memref<8x128xf32, #tpu.memory_space<vmem>>) attributes {dimension_semantics = [#tpu.dimension_semantics<parallel>, #tpu.dimension_semantics<parallel>, #tpu.dimension_semantics<arbitrary>], iteration_bounds = array<i64: 1, 1, 1>, scalar_prefetch = 1 : i64, scratch_operands = 0 : i64, tpu.core_type = #tpu.core_type<tc>, window_params = [{transform_indices = @transform_0, window_bounds = array<i64: 8, 128>}, {transform_indices = @transform_1, window_bounds = array<i64: 128, 128>}, {transform_indices = @transform_2, window_bounds = array<i64: 8, 128>}]} {
    %c0 = arith.constant 0 : index
    %c0_0 = arith.constant 0 : index
    %0 = vector.load %arg4[%c0, %c0_0] : memref<8x128xf32, #tpu.memory_space<vmem>>, vector<8x128xf32>
    %c0_1 = arith.constant 0 : index
    %1 = memref.load %arg3[%c0_1] : memref<1xf32, #tpu.memory_space<smem>>
    %2 = math.absf %0 : vector<8x128xf32>
    %3 = vector.broadcast %1 : f32 to vector<8x128xf32>
    %4 = arith.cmpf oge, %2, %3 : vector<8x128xf32>
    %cst = arith.constant 0.000000e+00 : f32
    %5 = vector.broadcast %cst : f32 to vector<8x128xf32>
    %6 = arith.select %4, %0, %5 : vector<8x128xi1>, vector<8x128xf32>
    %7 = arith.truncf %6 : vector<8x128xf32> to vector<8x128xbf16>
    %c0_2 = arith.constant 0 : index
    %c0_3 = arith.constant 0 : index
    %8 = vector.load %arg5[%c0_2, %c0_3] : memref<128x128xbf16, #tpu.memory_space<vmem>>, vector<128x128xbf16>
    %cst_4 = arith.constant dense<0.000000e+00> : vector<8x128xf32>
    %9 = tpu.matmul %7, %8, %cst_4 {dimension_numbers = #tpu.dot_dimension_numbers<[1], [0], [0], [1], [0, 0, 1, 1], [], []>} : vector<8x128xbf16>, vector<128x128xbf16>, vector<8x128xf32> -> vector<8x128xf32>
    %c0_5 = arith.constant 0 : index
    %c0_6 = arith.constant 0 : index
    %10 = vector.load %arg6[%c0_5, %c0_6] : memref<8x128xf32, #tpu.memory_space<vmem>>, vector<8x128xf32>
    tpu.vector_store %arg6[%c0_5, %c0_6], %9 {strides = array<i32>} : memref<8x128xf32, #tpu.memory_space<vmem>>, vector<8x128xf32>,
    return
  }
  func.func @transform_0(%arg0: i32, %arg1: i32, %arg2: i32, %arg3: memref<1xf32, #tpu.memory_space<smem>>) -> (i32, i32) {
    %c0_i32 = arith.constant 0 : i32
    return %arg0, %arg2 : i32, i32
  }
  func.func @transform_1(%arg0: i32, %arg1: i32, %arg2: i32, %arg3: memref<1xf32, #tpu.memory_space<smem>>) -> (i32, i32) {
    %c0_i32 = arith.constant 0 : i32
    return %arg2, %arg1 : i32, i32
  }
  func.func @transform_2(%arg0: i32, %arg1: i32, %arg2: i32, %arg3: memref<1xf32, #tpu.memory_space<smem>>) -> (i32, i32) {
    %c0_i32 = arith.constant 0 : i32
    return %arg0, %arg1 : i32, i32
  }
}

</mosaic_0001>

<llo_original>
// kernel: tpu_custom_call.1
$region0: #{tpu_custom_call.1}
  #allocation0 [shape = 'u32[]', space=smem, size = 0x4, offset = 0x4, fixed_abs, tag = 'smem constant byte address 0x4 - core index']
  #allocation1 [shape = 'u32[144,128]{1,0:T(1,128)}', space=vmem, size = 0x12000, scoped, tag = 'internal scratch']
  #allocation2 [shape = 's32[1]{0}', space=sflag, size = 0x4, scoped, tag = 'scoped memory for tpu_custom_call.1']
  #allocation3 [shape = 'f32[1]{0:T(128)S(6)}', space=smem, size = 0x200, scoped, tag = 'prefetched SMEM operand 0']
  %s0 = inlined_call_operand.<no memory space> [shape: f32[1], index: 0, kind: input, shape index: {}]
  %s1 = inlined_call_operand.hbm [shape: f32[8,128], index: 1, kind: input, shape index: {}]
  %s2 = inlined_call_operand.hbm [shape: bf16[128,128], index: 2, kind: input, shape index: {}]
  %s3 = inlined_call_operand.hbm [shape: f32[8,128], index: 3, kind: output, shape index: {}]
  %s4 = sld [smem:[#allocation0]]
  $region26: #{tpu_custom_call.1} parent=0
    _
  %s6 = ssub.s32 1, %s4
  %s7 = scalar_select 0, %s6, %s4
  %8 = sst [smem:[#allocation3]] %s0
  $region1: #{tpu_custom_call.1} parent=0
    #allocation4 [shape = 'u8[4096]{0}', space=vmem, size = 0x1000, scoped, tag = 'input window, operand 1, single buffered']
    #allocation5 [shape = 's32[1]{0}', space=sflag, size = 0x4, scoped, tag = 'scoped memory for tpu_custom_call.1']
    #allocation6 [shape = 's32[1]{0}', space=sflag, size = 0x4, scoped, tag = 'scoped memory for tpu_custom_call.1']
    #allocation7 [shape = 'u8[32768]{0}', space=vmem, size = 0x8000, scoped, tag = 'input window, operand 2, single buffered']
    #allocation8 [shape = 's32[1]{0}', space=sflag, size = 0x4, scoped, tag = 'scoped memory for tpu_custom_call.1']
    #allocation9 [shape = 'u8[4096]{0}', space=vmem, size = 0x1000, scoped, tag = 'output window, operand 0, single buffered']
    %9 = vsyncpa [#allocation5], 0
    %10 = vsyncpa [#allocation8], 0
    %11 = vsyncpa [#allocation6], 0
    // Predicated region
    $region2: #{tpu_custom_call.1} parent=1 // pred_check
      _
    $region3: #{tpu_custom_call.1} parent=1 // pred_check_branch
      %13 = sbr.rel (0) target = $region5
    $region4: #{tpu_custom_call.1} parent=1 // pred_region
      %s15 = ssub.s32 128, 128
      %16 = vsyncadd [#allocation5], %s15
      %s18 = sshll.u32 [#allocation4], 4
      %s19 = int_to_ptr.vmem [resolvable:$true] %s18
      %21 = dma.hbm_to_vmem [thread:$0]  %s1, 128, %s19, [#allocation5]
    $region5: #{tpu_custom_call.1} parent=1 // pred_fallthru
      _
    // Predicated region
    $region6: #{tpu_custom_call.1} parent=1 // pred_check
      _
    $region7: #{tpu_custom_call.1} parent=1 // pred_check_branch
      %23 = sbr.rel (0) target = $region9
    $region8: #{tpu_custom_call.1} parent=1 // pred_region
      %s25 = ssub.s32 1024, 1024
      %26 = vsyncadd [#allocation8], %s25
      %s27 = sshll.u32 [#allocation7], 4
      %s28 = int_to_ptr.vmem [resolvable:$true] %s27
      %33 = dma.hbm_to_vmem [thread:$0]  %s2, 1024, %s28, [#allocation8], 64, 64, 4
    $region9: #{tpu_custom_call.1} parent=1 // pred_fallthru
      _
    // Predicated region
    $region10: #{tpu_custom_call.1} parent=1 // pred_check
      _
    $region11: #{tpu_custom_call.1} parent=1 // pred_check_branch
      %35 = sbr.rel (0) target = $region13
    $region12: #{tpu_custom_call.1} parent=1 // pred_region
      %36 = dma.done [#allocation5], 128
    $region13: #{tpu_custom_call.1} parent=1 // pred_fallthru
      _
    // Predicated region
    $region14: #{tpu_custom_call.1} parent=1 // pred_check
      _
    $region15: #{tpu_custom_call.1} parent=1 // pred_check_branch
      %38 = sbr.rel (0) target = $region17
    $region16: #{tpu_custom_call.1} parent=1 // pred_region
      %39 = dma.done [#allocation8], 1024
    $region17: #{tpu_custom_call.1} parent=1 // pred_fallthru
      _
    %v41 = vld [vmem:[#allocation4] sm:$0xff]
    %s42 = sld [smem:[#allocation3]]
    %v43 = vand.u32 2147483647, %v41
    %v44 = vstv %s42
    %vm45 = vcmp.ge.f32.partialorder %v43, %v44
    %v46 = vsel %vm45, %v41, 0.0
    %v47 = vpack.c.bf16 %v46, %v46
    %v48 = vld [vmem:[#allocation7] sm:$0xf]
    %v49 = vld [vmem:[#allocation7 + $0x4] sm:$0xf]
    %v50 = vld [vmem:[#allocation7 + $0x8] sm:$0xf]
    %v51 = vld [vmem:[#allocation7 + $0xc] sm:$0xf]
    %v52 = vld [vmem:[#allocation7 + $0x10] sm:$0xf]
    %v53 = vld [vmem:[#allocation7 + $0x14] sm:$0xf]
    %v54 = vld [vmem:[#allocation7 + $0x18] sm:$0xf]
    %v55 = vld [vmem:[#allocation7 + $0x1c] sm:$0xf]
    %v56 = vld [vmem:[#allocation7 + $0x20] sm:$0xf]
    %v57 = vld [vmem:[#allocation7 + $0x24] sm:$0xf]
    %v58 = vld [vmem:[#allocation7 + $0x28] sm:$0xf]
    %v59 = vld [vmem:[#allocation7 + $0x2c] sm:$0xf]
    %v60 = vld [vmem:[#allocation7 + $0x30] sm:$0xf]
    %v61 = vld [vmem:[#allocation7 + $0x34] sm:$0xf]
    %v62 = vld [vmem:[#allocation7 + $0x38] sm:$0xf]
    %v63 = vld [vmem:[#allocation7 + $0x3c] sm:$0xf]
    %v80 = vunpack.c.l.b16 %v48
    %v81 = vunpack.c.l.b16 %v49
    %v82 = vunpack.c.l.b16 %v50
    %v83 = vunpack.c.l.b16 %v51
    %v84 = vunpack.c.l.b16 %v52
    %v85 = vunpack.c.l.b16 %v53
    %v86 = vunpack.c.l.b16 %v54
    %v87 = vunpack.c.l.b16 %v55
    %v88 = vunpack.c.l.b16 %v56
    %v89 = vunpack.c.l.b16 %v57
    %v90 = vunpack.c.l.b16 %v58
    %v91 = vunpack.c.l.b16 %v59
    %v92 = vunpack.c.l.b16 %v60
    %v93 = vunpack.c.l.b16 %v61
    %v94 = vunpack.c.l.b16 %v62
    %v95 = vunpack.c.l.b16 %v63
    %v96 = vpack.c.b16 %v81, %v80
    %v97 = vpack.c.b16 %v83, %v82
    %v98 = vpack.c.b16 %v85, %v84
    %v99 = vpack.c.b16 %v87, %v86
    %v100 = vpack.c.b16 %v89, %v88
    %v101 = vpack.c.b16 %v91, %v90
    %v102 = vpack.c.b16 %v93, %v92
    %v103 = vpack.c.b16 %v95, %v94
    %112 = vmatprep.subr.bf16.mxu0 0
    %113 = vmatpush1.bf16.msra.mxu0 %v103
    %114 = vmatprep.subr.bf16.mxu0 0
    %115 = vmatpush1.bf16.msra.mxu0 %v102
    %116 = vmatprep.subr.bf16.mxu0 0
    %117 = vmatpush1.bf16.msra.mxu0 %v101
    %118 = vmatprep.subr.bf16.mxu0 0
    %119 = vmatpush1.bf16.msra.mxu0 %v100
    %120 = vmatprep.subr.bf16.mxu0 0
    %121 = vmatpush1.bf16.msra.mxu0 %v99
    %122 = vmatprep.subr.bf16.mxu0 0
    %123 = vmatpush1.bf16.msra.mxu0 %v98
    %124 = vmatprep.subr.bf16.mxu0 0
    %125 = vmatpush1.bf16.msra.mxu0 %v97
    %126 = vmatprep.subr.bf16.mxu0 0
    %127 = vmatpush1.bf16.msra.mxu0 %v96
    %128 = vmatprep.subr.bf16.mxu0 0
    %129 = vmatpush2.bf16.msra.mxu0 0
    %130 = vmatprep.subr.bf16.mxu0 0
    %131 = vmatpush2.bf16.msra.mxu0 0
    %132 = vmatprep.subr.bf16.mxu0 0
    %133 = vmatpush2.bf16.msra.mxu0 0
    %134 = vmatprep.subr.bf16.mxu0 0
    %135 = vmatpush2.bf16.msra.mxu0 0
    %136 = vmatprep.subr.bf16.mxu0 0
    %137 = vmatpush2.bf16.msra.mxu0 0
    %138 = vmatprep.subr.bf16.mxu0 0
    %139 = vmatpush2.bf16.msra.mxu0 0
    %140 = vmatprep.subr.bf16.mxu0 0
    %141 = vmatpush2.bf16.msra.mxu0 0
    %142 = vmatprep.subr.bf16.mxu0 0
    %143 = vmatpush2.bf16.msra.mxu0 0
    %144 = vmatprep.mubr.bf16.mxu0 0
    %145 = vmatmul.mubr.bf16.gmra.mxu0 %v47
    %v146 = vpop.f32.mrf.mxu0
    %v147 = vadd.f32 0.0, %v146
    %v148 = vpop.f32.mrf.mxu0
    %v149 = vpop.f32.mrf.mxu0
    %v150 = vpop.f32.mrf.mxu0
    %151 = vdwg.mxu0
    %152 = vst [vmem:[#allocation9] sm:$0xff] %v147
    // Predicated region
    $region18: #{tpu_custom_call.1} parent=1 // pred_check
      _
    $region19: #{tpu_custom_call.1} parent=1 // pred_check_branch
      %154 = sbr.rel (0) target = $region21
    $region20: #{tpu_custom_call.1} parent=1 // pred_region
      %s156 = ssub.s32 128, 128
      %157 = vsyncadd [#allocation6], %s156
      %s159 = sshll.u32 [#allocation9], 4
      %s160 = int_to_ptr.vmem [resolvable:$true] %s159
      %162 = dma.vmem_to_hbm [thread:$0]  %s160, 128, %s3, [#allocation6]
    $region21: #{tpu_custom_call.1} parent=1 // pred_fallthru
      _
    // Predicated region
    $region22: #{tpu_custom_call.1} parent=1 // pred_check
      _
    $region23: #{tpu_custom_call.1} parent=1 // pred_check_branch
      %164 = sbr.rel (0) target = $region25
    $region24: #{tpu_custom_call.1} parent=1 // pred_region
      %165 = dma.done [#allocation6], 128
    $region25: #{tpu_custom_call.1} parent=1 // pred_fallthru
      _
    %166 = vsyncpa [#allocation5], 1
    %167 = vsyncpa [#allocation8], 1
    %168 = vsyncpa [#allocation6], 1

</llo_original>
